<compile_context>
chip_gen: v5e
topology: v5e:2x2
jax: 0.10.0
libtpu: 0.0.40
codegen_flags: <defaults>
</compile_context>

<pallas_src>
import jax
import jax.numpy as jnp
from jax.experimental import pallas as pl
from jax.experimental.pallas import tpu as pltpu


def _round_up(x, m):
    return ((x + m - 1) // m) * m


def linear_kernel(x_ref, wt_ref, b_ref, o_ref):
    # x_ref: (TM, D)    wt_ref: (D, DP)  pre-transposed (in, out), lane-padded
    # b_ref: (1, DP)    o_ref: (TM, DP)  lane-dense
    y = jnp.dot(x_ref[...], wt_ref[...], preferred_element_type=jnp.float32)
    y = y + b_ref[...].astype(jnp.float32)
    o_ref[...] = y.astype(o_ref.dtype)


def linear_embedding(x, weight, bias, *, tm=512):
    """y = x @ weight.T + bias, matching torch.nn.Linear.

    x: (..., dim)   weight: (dim, dim)  (out_features, in_features)   bias: (dim,)
    """
    orig_shape = x.shape
    dim = orig_shape[-1]
    x2d = x.reshape(-1, dim)          # (M, dim) — glue reshape in plain JAX
    m = x2d.shape[0]
    itemsize = jnp.dtype(x.dtype).itemsize

    # Lane-pad the OUTPUT feature dim to a multiple of 128 (unmasked stores,
    # full MXU width).  Only weight/bias get padded — both tiny.
    dp = _round_up(dim, 128)
    wt = weight.T                     # (in, out) — transpose once, outside kernel
    bias_p = bias
    if dp != dim:
        wt = jnp.pad(wt, ((0, 0), (0, dp - dim)))
        bias_p = jnp.pad(bias, (0, dp - dim))
    bias2d = bias_p.reshape(1, dp)

    # Row tile: as big as the VMEM budget allows (resident weight + bias +
    # double-buffered x/out tiles), but don't over-pad tiny problems.
    tm = min(tm, _round_up(m, 8))
    w_bytes = dim * dp * jnp.dtype(wt.dtype).itemsize
    per_row = 2 * (dim + dp) * itemsize           # double-buffered in + out tiles
    budget = 24 * 1024 * 1024                     # stay under 32 MiB scoped default
    while tm > 8 and w_bytes + tm * per_row > budget:
        tm = max(8, tm // 2)
    tm = _round_up(tm, 8)

    mp = _round_up(m, tm)
    if mp != m:
        x2d = jnp.pad(x2d, ((0, mp - m), (0, 0)))

    grid = (mp // tm,)

    est = w_bytes + tm * per_row + 4 * dp * itemsize
    cp_kwargs = dict(dimension_semantics=("parallel",))
    if est > 32 * 1024 * 1024:
        # Raise scoped-VMEM limit only when the resident weight truly needs it.
        cp_kwargs["vmem_limit_bytes"] = min(int(est * 1.5), 120 * 1024 * 1024)

    cost = pl.CostEstimate(
        flops=2 * mp * dim * dp + mp * dp,
        transcendentals=0,
        bytes_accessed=(mp * dim + dim * dp + dp + mp * dp) * itemsize,
    )

    out = pl.pallas_call(
        linear_kernel,
        out_shape=jax.ShapeDtypeStruct((mp, dp), x.dtype),
        grid=grid,
        in_specs=[
            pl.BlockSpec((tm, dim), lambda i: (i, 0)),   # x tile (last dim = full array dim)
            pl.BlockSpec((dim, dp), lambda i: (0, 0)),   # weight, VMEM-resident across steps
            pl.BlockSpec((1, dp), lambda i: (0, 0)),     # bias, VMEM-resident
        ],
        out_specs=pl.BlockSpec((tm, dp), lambda i: (i, 0)),
        compiler_params=pltpu.CompilerParams(**cp_kwargs),
        cost_estimate=cost,
    )(x2d, wt, bias2d)

    out = out[:m, :dim]
    return out.reshape(orig_shape)


if __name__ == "__main__":
    # Small shapes consistent with the module: x is (batch, seq, dim).
    batch, seq, dim = 2, 8, 32

    key = jax.random.PRNGKey(0)
    kx, kw, kb = jax.random.split(key, 3)

    # Deterministic params (PyTorch nn.Linear default: U(-1/sqrt(dim), 1/sqrt(dim))).
    bound = 1.0 / (dim ** 0.5)
    weight = jax.random.uniform(kw, (dim, dim), jnp.float32, -bound, bound)
    bias = jax.random.uniform(kb, (dim,), jnp.float32, -bound, bound)

    x = jax.random.normal(kx, (batch, seq, dim), jnp.float32)

    y = jax.block_until_ready(linear_embedding(x, weight, bias))

    # Cross-check against plain JAX reference.
    y_ref = x @ weight.T + bias
    assert y.shape == (batch, seq, dim)
    assert jnp.allclose(y, y_ref, atol=1e-5, rtol=1e-5)

    print("KERNEL_OK")
</pallas_src>

<mosaic_0001>
module attributes {stable_mosaic.version = 11 : i64} {
  func.func @linear_kernel(%arg0: i32, %arg1: memref<16x32xf32, #tpu.memory_space<vmem>>, %arg2: memref<32x128xf32, #tpu.memory_space<vmem>>, %arg3: memref<1x128xf32, #tpu.memory_space<vmem>>, %arg4: memref<16x128xf32, #tpu.memory_space<vmem>>) attributes {dimension_semantics = [#tpu.dimension_semantics<parallel>], iteration_bounds = array<i64: 1>, scalar_prefetch = 0 : i64, scratch_operands = 0 : i64, tpu.core_type = #tpu.core_type<tc>, window_params = [{transform_indices = @transform_0, window_bounds = array<i64: 16, 32>}, {pipeline_mode = #tpu.pipeline_mode<synchronous>, transform_indices = @transform_1, window_bounds = array<i64: 32, 128>}, {pipeline_mode = #tpu.pipeline_mode<synchronous>, transform_indices = @transform_2, window_bounds = array<i64: 1, 128>}, {transform_indices = @transform_3, window_bounds = array<i64: 16, 128>}]} {
    %c0 = arith.constant 0 : index
    %c0_0 = arith.constant 0 : index
    %0 = vector.load %arg1[%c0, %c0_0] : memref<16x32xf32, #tpu.memory_space<vmem>>, vector<16x32xf32>
    %c0_1 = arith.constant 0 : index
    %c0_2 = arith.constant 0 : index
    %1 = vector.load %arg2[%c0_1, %c0_2] : memref<32x128xf32, #tpu.memory_space<vmem>>, vector<32x128xf32>
    %cst = arith.constant dense<0.000000e+00> : vector<16x128xf32>
    %2 = tpu.matmul %0, %1, %cst {dimension_numbers = #tpu.dot_dimension_numbers<[1], [0], [0], [1], [0, 0, 1, 1], [], []>} : vector<16x32xf32>, vector<32x128xf32>, vector<16x128xf32> -> vector<16x128xf32>
    %c0_3 = arith.constant 0 : index
    %c0_4 = arith.constant 0 : index
    %3 = vector.load %arg3[%c0_3, %c0_4] : memref<1x128xf32, #tpu.memory_space<vmem>>, vector<1x128xf32>
    %4 = vector.broadcast %3 : vector<1x128xf32> to vector<16x128xf32>
    %5 = arith.addf %2, %4 : vector<16x128xf32>
    %c0_5 = arith.constant 0 : index
    %c0_6 = arith.constant 0 : index
    %6 = vector.load %arg4[%c0_5, %c0_6] : memref<16x128xf32, #tpu.memory_space<vmem>>, vector<16x128xf32>
    tpu.vector_store %arg4[%c0_5, %c0_6], %5 {strides = array<i32>} : memref<16x128xf32, #tpu.memory_space<vmem>>, vector<16x128xf32>,
    return
  }
  func.func @transform_0(%arg0: i32) -> (i32, i32) {
    %c0_i32 = arith.constant 0 : i32
    %c0_i32_0 = arith.constant 0 : i32
    return %arg0, %c0_i32 : i32, i32
  }
  func.func @transform_1(%arg0: i32) -> (i32, i32) {
    %c0_i32 = arith.constant 0 : i32
    %c0_i32_0 = arith.constant 0 : i32
    %c0_i32_1 = arith.constant 0 : i32
    return %c0_i32, %c0_i32_0 : i32, i32
  }
  func.func @transform_2(%arg0: i32) -> (i32, i32) {
    %c0_i32 = arith.constant 0 : i32
    %c0_i32_0 = arith.constant 0 : i32
    %c0_i32_1 = arith.constant 0 : i32
    return %c0_i32, %c0_i32_0 : i32, i32
  }
  func.func @transform_3(%arg0: i32) -> (i32, i32) {
    %c0_i32 = arith.constant 0 : i32
    %c0_i32_0 = arith.constant 0 : i32
    return %arg0, %c0_i32 : i32, i32
  }
}

</mosaic_0001>

<llo_original>
// kernel: tpu_custom_call.1
$region0: #{tpu_custom_call.1}
  #allocation0 [shape = 'u32[]', space=smem, size = 0x4, offset = 0x4, fixed_abs, tag = 'smem constant byte address 0x4 - core index']
  #allocation1 [shape = 'u32[72,128]{1,0:T(1,128)}', space=vmem, size = 0x9000, scoped, tag = 'internal scratch']
  %s0 = inlined_call_operand.hbm [shape: f32[16,32], index: 0, kind: input, shape index: {}]
  %s1 = inlined_call_operand.hbm [shape: f32[32,128], index: 1, kind: input, shape index: {}]
  %s2 = inlined_call_operand.vmem [shape: f32[1,128], index: 2, kind: input, shape index: {}]
  %s3 = inlined_call_operand.hbm [shape: f32[16,128], index: 3, kind: output, shape index: {}]
  %s4 = sld [smem:[#allocation0]]
  $region30: #{tpu_custom_call.1} parent=0
    _
  %s6 = ssub.s32 1, %s4
  %s7 = scalar_select 0, %s6, %s4
  $region1: #{tpu_custom_call.1} parent=0
    #allocation2 [shape = 'u8[8192]{0}', space=vmem, size = 0x2000, scoped, tag = 'input window, operand 0, single buffered']
    #allocation3 [shape = 's32[1]{0}', space=sflag, size = 0x4, scoped, tag = 'scoped memory for tpu_custom_call.1']
    #allocation4 [shape = 's32[1]{0}', space=sflag, size = 0x4, scoped, tag = 'scoped memory for tpu_custom_call.1']
    #allocation5 [shape = 'u8[16384]{0}', space=vmem, size = 0x4000, scoped, tag = 'input window, operand 1, single buffered']
    #allocation6 [shape = 's32[1]{0}', space=sflag, size = 0x4, scoped, tag = 'scoped memory for tpu_custom_call.1']
    #allocation7 [shape = 'u8[8192]{0}', space=vmem, size = 0x2000, scoped, tag = 'output window, operand 0, single buffered']
    %8 = vsyncpa [#allocation3], 0
    %9 = vsyncpa [#allocation6], 0
    %10 = vsyncpa [#allocation4], 0
    // Predicated region
    $region2: #{tpu_custom_call.1} parent=1 // pred_check
      _
    $region3: #{tpu_custom_call.1} parent=1 // pred_check_branch
      %12 = sbr.rel (0) target = $region5
    $region4: #{tpu_custom_call.1} parent=1 // pred_region
      %14 = vsyncadd [#allocation3], 0
      %s15 = sshll.u32 %s0, 4
      %s16 = int_to_ptr.hbm [resolvable:$true] %s15
      %s17 = sshll.u32 [#allocation2], 4
      %s18 = int_to_ptr.vmem [resolvable:$true] %s17
      %23 = dma.hbm_to_vmem [thread:$0]  %s16, 256, %s18, [#allocation3], 128, 128, 8
    $region5: #{tpu_custom_call.1} parent=1 // pred_fallthru
      _
    // Predicated region
    $region6: #{tpu_custom_call.1} parent=1 // pred_check
      _
    $region7: #{tpu_custom_call.1} parent=1 // pred_check_branch
      %25 = sbr.rel (0) target = $region9
    $region8: #{tpu_custom_call.1} parent=1 // pred_region
      %27 = vsyncadd [#allocation6], 0
      %s28 = sshll.u32 %s1, 4
      %s29 = int_to_ptr.hbm [resolvable:$true] %s28
      %s30 = sshll.u32 [#allocation5], 4
      %s31 = int_to_ptr.vmem [resolvable:$true] %s30
      %36 = dma.hbm_to_vmem [thread:$0]  %s29, 512, %s31, [#allocation6], 128, 128, 8
    $region9: #{tpu_custom_call.1} parent=1 // pred_fallthru
      _
    // Predicated region
    $region10: #{tpu_custom_call.1} parent=1 // pred_check
      _
    $region11: #{tpu_custom_call.1} parent=1 // pred_check_branch
      %38 = sbr.rel (0) target = $region13
    $region12: #{tpu_custom_call.1} parent=1 // pred_region
      _
    $region13: #{tpu_custom_call.1} parent=1 // pred_fallthru
      _
    // Predicated region
    $region14: #{tpu_custom_call.1} parent=1 // pred_check
      _
    $region15: #{tpu_custom_call.1} parent=1 // pred_check_branch
      %40 = sbr.rel (0) target = $region17
    $region16: #{tpu_custom_call.1} parent=1 // pred_region
      %42 = dma.done [#allocation3], 256
    $region17: #{tpu_custom_call.1} parent=1 // pred_fallthru
      _
    // Predicated region
    $region18: #{tpu_custom_call.1} parent=1 // pred_check
      _
    $region19: #{tpu_custom_call.1} parent=1 // pred_check_branch
      %44 = sbr.rel (0) target = $region21
    $region20: #{tpu_custom_call.1} parent=1 // pred_region
      %46 = dma.done [#allocation6], 512
    $region21: #{tpu_custom_call.1} parent=1 // pred_fallthru
      _
    %v47 = vld [vmem:[#allocation2] sm:$0xff]
    %v48 = vld [vmem:[#allocation2 + $0x8] sm:$0xff]
    %v49 = vld [vmem:[#allocation5] sm:$0xff]
    %v50 = vld [vmem:[#allocation5 + $0x8] sm:$0xff]
    %v51 = vld [vmem:[#allocation5 + $0x10] sm:$0xff]
    %v52 = vld [vmem:[#allocation5 + $0x18] sm:$0xff]
    %v53 = vld [vmem:[%s2] sm:$0x1]
    %v55 = vperm.slane %v53, 0
    %vm57 = vcmask 261120
    %v59 = vsel %vm57, %v47, 0
    %v62 = vsel %vm57, %v48, 0
    %64 = vmatpush.msra.mxu0 0.0
    %65 = vmatpush.msra.mxu0 0.0
    %66 = vmatpush.msra.mxu0 0.0
    %67 = vmatpush.msra.mxu0 0.0
    %68 = vmatpush.msra.mxu0 0.0
    %69 = vmatpush.msra.mxu0 0.0
    %70 = vmatpush.msra.mxu0 0.0
    %71 = vmatpush.msra.mxu0 0.0
    %72 = vmatpush.msra.mxu0 0.0
    %73 = vmatpush.msra.mxu0 0.0
    %74 = vmatpush.msra.mxu0 0.0
    %75 = vmatpush.msra.mxu0 0.0
    %76 = vmatpush.msra.mxu0 %v52
    %77 = vmatpush.msra.mxu0 %v51
    %78 = vmatpush.msra.mxu0 %v50
    %79 = vmatpush.msra.mxu0 %v49
    %80 = vmatmul.f32.gmra.mxu0 %v59
    %v81 = vpop.f32.mrf.mxu0
    %v82 = vadd.f32 %v55, %v81
    %83 = vmatmul.f32.gmra.mxu0 %v62
    %v84 = vpop.f32.mrf.mxu0
    %v85 = vadd.f32 %v55, %v84
    %86 = vdwg.mxu0
    %87 = vst [vmem:[#allocation7] sm:$0xff] %v82
    %88 = vst [vmem:[#allocation7 + $0x8] sm:$0xff] %v85
    // Predicated region
    $region22: #{tpu_custom_call.1} parent=1 // pred_check
      _
    $region23: #{tpu_custom_call.1} parent=1 // pred_check_branch
      %90 = sbr.rel (0) target = $region25
    $region24: #{tpu_custom_call.1} parent=1 // pred_region
      %92 = vsyncadd [#allocation4], 0
      %s93 = sshll.u32 [#allocation7], 4
      %s94 = int_to_ptr.vmem [resolvable:$true] %s93
      %s95 = sshll.u32 %s3, 4
      %s96 = int_to_ptr.hbm [resolvable:$true] %s95
      %101 = dma.vmem_to_hbm [thread:$0]  %s94, 256, %s96, [#allocation4], 128, 128, 8
    $region25: #{tpu_custom_call.1} parent=1 // pred_fallthru
      _
    // Predicated region
    $region26: #{tpu_custom_call.1} parent=1 // pred_check
      _
    $region27: #{tpu_custom_call.1} parent=1 // pred_check_branch
      %103 = sbr.rel (0) target = $region29
    $region28: #{tpu_custom_call.1} parent=1 // pred_region
      %105 = dma.done [#allocation4], 256
    $region29: #{tpu_custom_call.1} parent=1 // pred_fallthru
      _
    %106 = vsyncpa [#allocation3], 1
    %107 = vsyncpa [#allocation6], 1
    %108 = vsyncpa [#allocation4], 1

</llo_original>
